<compile_context>
chip_gen: v7x
topology: tpu7x:2x2x1
jax: 0.10.0
libtpu: 0.0.40
codegen_flags: <defaults>
</compile_context>

<pallas_src>
import functools

import jax
import jax.numpy as jnp
from jax.experimental import pallas as pl
from jax.experimental.pallas import tpu as pltpu


def _gap_classifier_kernel(x_ref, w_ref, b_ref, o_ref, *, num_channels, hw_pad):
    # x_ref: (TB, C*HW_pad) native-dtype tile, channel-major rows, zero-padded
    # w_ref: (C, K)  classifier weight with 1/std and 1/HW folded in (f32)
    # b_ref: (1, K)  classifier bias with -(mean/std)@W folded in (f32)
    # o_ref: (TB, K) logits for this batch tile
    out = None
    for c in range(num_channels):  # C is tiny (3); fully unrolled at trace time
        # Static slice on the Ref: loads only this channel's lane-aligned span,
        # upcast to f32 right after the load (cheap VPU op, even on v5e).
        xc = x_ref[:, c * hw_pad:(c + 1) * hw_pad].astype(jnp.float32)
        pooled_c = jnp.sum(xc, axis=-1, keepdims=True)          # (TB, 1)
        term = pooled_c * w_ref[c:c + 1, :]                      # (TB, K) VPU bcast FMA
        out = term if out is None else out + term
    o_ref[...] = (out + b_ref[...]).astype(o_ref.dtype)


def _vmem_capacity_bytes():
    """Per-core VMEM capacity; conservative (v7x-sized) fallback off-TPU."""
    try:
        return int(pltpu.get_tpu_info().vmem_capacity_bytes)
    except Exception:
        return 64 << 20


def _choose_batch_tile(n, row_bytes, x_budget_bytes):
    """Pick TB (multiple of 8, sublane-dense) for the batch grid axis.

    Constraints / preferences:
      * double-buffered x block (2 * TB * row_bytes) fits the VMEM budget,
      * >= 4 grid steps when the batch allows it (so each of v7x's two
        TensorCores gets >= 2 steps and keeps intra-core DMA/compute overlap),
      * even step count (no idle core on the last block),
      * then the largest tile (fewest ~0.35us/step pipeline overheads).
    """
    if n < 8:
        return n  # block dim == full dim is always legal
    feasible = []
    tb = 8
    while tb <= n + 7:
        if 2 * tb * row_bytes <= x_budget_bytes:
            feasible.append(tb)
        tb += 8
    if not feasible:
        return 8  # smallest sublane-dense tile; vmem_limit covers the rest

    def key(tb):
        steps = pl.cdiv(n, tb)
        return (steps >= 4, steps % 2 == 0, tb)

    return max(feasible, key=key)


def timm_model_forward(x_nchw, mean, std, w, b):
    """Forward pass of `timm_model`: per-channel normalize, then the stand-in
    backbone (global average pool + linear classifier).  Returns (N, K) f32."""
    N, C, H, W = x_nchw.shape
    HW = H * W
    K = w.shape[1]

    # Fold normalization and the 1/HW pooling scale through the linear head:
    #   mean_hw((p - mean)/std) @ W + b
    #     == sum_hw(p) @ (W / (std*HW)) + (b - (mean/std) @ W)
    w32 = w.astype(jnp.float32)
    inv_std = (1.0 / std.astype(jnp.float32)).reshape(C)
    mean_f = mean.astype(jnp.float32).reshape(C)
    w_f = w32 * (inv_std / float(HW))[:, None]                      # (C, K)
    b_f = (b.astype(jnp.float32) - (mean_f * inv_std) @ w32).reshape(1, K)

    # Keep the NATIVE dtype (bf16/uint8 images halve/quarter the HBM traffic);
    # pad each channel's HW span to a multiple of 128 so in-kernel channel
    # slices are lane-aligned.  Zero padding is exact (sum-pool, 1/HW in W').
    x3 = x_nchw.reshape(N, C, HW)
    if HW % 128 != 0:
        hw_pad = ((HW + 127) // 128) * 128
        x3 = jnp.pad(x3, ((0, 0), (0, 0), (0, hw_pad - HW)))
    else:
        hw_pad = HW
    x_flat = x3.reshape(N, C * hw_pad)

    # Generation-aware VMEM budgeting + explicit scoped-VMEM limit.
    cap = _vmem_capacity_bytes()
    x_budget = max(8 << 20, (cap * 3) // 8)        # double-buffered x block budget
    row_bytes = C * hw_pad * x_flat.dtype.itemsize
    tb = _choose_batch_tile(N, row_bytes, x_budget)

    x_block_bytes = tb * row_bytes
    out_block_bytes = tb * K * 4
    wb_bytes = (C * K + K) * 4
    footprint = 2 * (x_block_bytes + out_block_bytes + wb_bytes)   # double-buffered
    vmem_limit = min(cap - (8 << 20), max(footprint + (4 << 20), 16 << 20))

    kernel = functools.partial(_gap_classifier_kernel,
                               num_channels=C, hw_pad=hw_pad)

    return pl.pallas_call(
        kernel,
        out_shape=jax.ShapeDtypeStruct((N, K), jnp.float32),
        grid_spec=pltpu.PrefetchScalarGridSpec(
            num_scalar_prefetch=0,
            grid=(pl.cdiv(N, tb),),           # ragged last block is masked
            in_specs=[
                pl.BlockSpec((tb, C * hw_pad), lambda i: (i, 0)),
                pl.BlockSpec((C, K), lambda i: (0, 0)),
                pl.BlockSpec((1, K), lambda i: (0, 0)),
            ],
            out_specs=pl.BlockSpec((tb, K), lambda i: (i, 0)),
        ),
        compiler_params=pltpu.CompilerParams(
            dimension_semantics=("parallel",),
            vmem_limit_bytes=int(vmem_limit)),
    )(x_flat, w_f, b_f)


if __name__ == "__main__":
    # Small deterministic shapes consistent with the module's forward
    # (3 input channels because mean/std are viewed as (3,1,1)).
    N, C, H, W = 16, 3, 16, 16
    NUM_CLASSES = 10

    key = jax.random.PRNGKey(0)
    kx, kw, kb = jax.random.split(key, 3)

    x = jax.random.normal(kx, (N, C, H, W), dtype=jnp.float32)

    # timm default_cfg-style ImageNet normalization constants.
    mean = jnp.array([0.485, 0.456, 0.406], dtype=jnp.float32)
    std = jnp.array([0.229, 0.224, 0.225], dtype=jnp.float32)

    # Deterministic synthetic classifier-head parameters.
    w = jax.random.normal(kw, (C, NUM_CLASSES), dtype=jnp.float32) * 0.1
    b = jax.random.normal(kb, (NUM_CLASSES,), dtype=jnp.float32) * 0.01

    logits = timm_model_forward(x, mean, std, w, b)
    jax.block_until_ready(logits)

    # Pure-JAX reference (normalize -> GAP -> linear), un-folded.
    xn_ref = (x - mean.reshape(1, C, 1, 1)) / std.reshape(1, C, 1, 1)
    pooled_ref = xn_ref.mean(axis=(2, 3))                  # (N, C)
    ref = pooled_ref @ w + b                               # (N, K)
    assert jnp.allclose(logits, ref, atol=1e-5, rtol=1e-4), "mismatch vs reference"

    print("KERNEL_OK")
</pallas_src>

<mosaic_0001>
module attributes {stable_mosaic.version = 11 : i64} {
  func.func @_gap_classifier_kernel(%arg0: i32, %arg1: memref<8x768xf32, #tpu.memory_space<vmem>>, %arg2: memref<3x10xf32, #tpu.memory_space<vmem>>, %arg3: memref<1x10xf32, #tpu.memory_space<vmem>>, %arg4: memref<8x10xf32, #tpu.memory_space<vmem>>) attributes {dimension_semantics = [#tpu.dimension_semantics<parallel>], iteration_bounds = array<i64: 2>, scalar_prefetch = 0 : i64, scratch_operands = 0 : i64, tpu.core_type = #tpu.core_type<tc>, window_params = [{transform_indices = @transform_0, window_bounds = array<i64: 8, 768>}, {pipeline_mode = #tpu.pipeline_mode<synchronous>, transform_indices = @transform_1, window_bounds = array<i64: 3, 10>}, {pipeline_mode = #tpu.pipeline_mode<synchronous>, transform_indices = @transform_2, window_bounds = array<i64: 1, 10>}, {transform_indices = @transform_3, window_bounds = array<i64: 8, 10>}]} {
    %c0 = arith.constant 0 : index
    %c0_0 = arith.constant 0 : index
    %0 = vector.load %arg1[%c0, %c0_0] : memref<8x768xf32, #tpu.memory_space<vmem>>, vector<8x256xf32>
    %cst = arith.constant dense<0.000000e+00> : vector<8xf32>
    %1 = vector.multi_reduction <add>, %0, %cst [1] : vector<8x256xf32> to vector<8xf32>
    %2 = vector.shape_cast %1 : vector<8xf32> to vector<8x1xf32>
    %c0_1 = arith.constant 0 : index
    %c0_2 = arith.constant 0 : index
    %3 = vector.load %arg2[%c0_1, %c0_2] : memref<3x10xf32, #tpu.memory_space<vmem>>, vector<1x10xf32>
    %4 = vector.broadcast %2 : vector<8x1xf32> to vector<8x10xf32>
    %5 = vector.broadcast %3 : vector<1x10xf32> to vector<8x10xf32>
    %6 = arith.mulf %4, %5 : vector<8x10xf32>
    %c0_3 = arith.constant 0 : index
    %c256 = arith.constant 256 : index
    %7 = vector.load %arg1[%c0_3, %c256] : memref<8x768xf32, #tpu.memory_space<vmem>>, vector<8x256xf32>
    %cst_4 = arith.constant dense<0.000000e+00> : vector<8xf32>
    %8 = vector.multi_reduction <add>, %7, %cst_4 [1] : vector<8x256xf32> to vector<8xf32>
    %9 = vector.shape_cast %8 : vector<8xf32> to vector<8x1xf32>
    %c1 = arith.constant 1 : index
    %c0_5 = arith.constant 0 : index
    %10 = vector.load %arg2[%c1, %c0_5] : memref<3x10xf32, #tpu.memory_space<vmem>>, vector<1x10xf32>
    %11 = vector.broadcast %9 : vector<8x1xf32> to vector<8x10xf32>
    %12 = vector.broadcast %10 : vector<1x10xf32> to vector<8x10xf32>
    %13 = arith.mulf %11, %12 : vector<8x10xf32>
    %14 = arith.addf %6, %13 : vector<8x10xf32>
    %c0_6 = arith.constant 0 : index
    %c512 = arith.constant 512 : index
    %15 = vector.load %arg1[%c0_6, %c512] : memref<8x768xf32, #tpu.memory_space<vmem>>, vector<8x256xf32>
    %cst_7 = arith.constant dense<0.000000e+00> : vector<8xf32>
    %16 = vector.multi_reduction <add>, %15, %cst_7 [1] : vector<8x256xf32> to vector<8xf32>
    %17 = vector.shape_cast %16 : vector<8xf32> to vector<8x1xf32>
    %c2 = arith.constant 2 : index
    %c0_8 = arith.constant 0 : index
    %18 = vector.load %arg2[%c2, %c0_8] : memref<3x10xf32, #tpu.memory_space<vmem>>, vector<1x10xf32>
    %19 = vector.broadcast %17 : vector<8x1xf32> to vector<8x10xf32>
    %20 = vector.broadcast %18 : vector<1x10xf32> to vector<8x10xf32>
    %21 = arith.mulf %19, %20 : vector<8x10xf32>
    %22 = arith.addf %14, %21 : vector<8x10xf32>
    %c0_9 = arith.constant 0 : index
    %c0_10 = arith.constant 0 : index
    %23 = vector.load %arg3[%c0_9, %c0_10] : memref<1x10xf32, #tpu.memory_space<vmem>>, vector<1x10xf32>
    %24 = vector.broadcast %23 : vector<1x10xf32> to vector<8x10xf32>
    %25 = arith.addf %22, %24 : vector<8x10xf32>
    %c0_11 = arith.constant 0 : index
    %c0_12 = arith.constant 0 : index
    %26 = vector.load %arg4[%c0_11, %c0_12] : memref<8x10xf32, #tpu.memory_space<vmem>>, vector<8x10xf32>
    tpu.vector_store %arg4[%c0_11, %c0_12], %25 {strides = array<i32>} : memref<8x10xf32, #tpu.memory_space<vmem>>, vector<8x10xf32>,
    return
  }
  func.func @transform_0(%arg0: i32) -> (i32, i32) {
    %c0_i32 = arith.constant 0 : i32
    %c0_i32_0 = arith.constant 0 : i32
    return %arg0, %c0_i32 : i32, i32
  }
  func.func @transform_1(%arg0: i32) -> (i32, i32) {
    %c0_i32 = arith.constant 0 : i32
    %c0_i32_0 = arith.constant 0 : i32
    %c0_i32_1 = arith.constant 0 : i32
    return %c0_i32, %c0_i32_0 : i32, i32
  }
  func.func @transform_2(%arg0: i32) -> (i32, i32) {
    %c0_i32 = arith.constant 0 : i32
    %c0_i32_0 = arith.constant 0 : i32
    %c0_i32_1 = arith.constant 0 : i32
    return %c0_i32, %c0_i32_0 : i32, i32
  }
  func.func @transform_3(%arg0: i32) -> (i32, i32) {
    %c0_i32 = arith.constant 0 : i32
    %c0_i32_0 = arith.constant 0 : i32
    return %arg0, %c0_i32 : i32, i32
  }
}

</mosaic_0001>

<llo_original>
// kernel: tpu_custom_call.1
$region0: #{tpu_custom_call.1}
  #allocation0 [shape = 'u32[]', space=smem, size = 0x4, offset = 0x4, fixed_abs, tag = 'smem constant byte address 0x4 - core index']
  #allocation1 [shape = 'u32[144,128]{1,0:T(1,128)}', space=vmem, size = 0x12000, scoped, tag = 'internal scratch']
  %s0 = inlined_call_operand.hbm [shape: f32[16,768], index: 0, kind: input, shape index: {}]
  %s1 = inlined_call_operand.hbm [shape: f32[3,10], index: 1, kind: input, shape index: {}]
  %s2 = inlined_call_operand.vmem [shape: f32[1,10], index: 2, kind: input, shape index: {}]
  %s3 = inlined_call_operand.hbm [shape: f32[16,10], index: 3, kind: output, shape index: {}]
  %s4 = sld [smem:[#allocation0]]
  $region53: #{tpu_custom_call.1} parent=0
    _
  %s6 = ssub.s32 1, %s4
  %s7 = scalar_select 0, %s6, %s4
  $region1: #{tpu_custom_call.1} parent=0
    #allocation2 [shape = 'u8[49152]{0}', space=vmem, size = 0xc000, scoped, tag = 'input window, operand 0']
    #allocation3 [shape = 's32[2]{0}', space=sflag, size = 0x8, scoped, tag = 'scoped memory for tpu_custom_call.1']
    #allocation4 [shape = 's32[2]{0}', space=sflag, size = 0x8, scoped, tag = 'scoped memory for tpu_custom_call.1']
    #allocation5 [shape = 'u8[2048]{0}', space=vmem, size = 0x800, scoped, tag = 'input window, operand 1, single buffered']
    #allocation6 [shape = 's32[1]{0}', space=sflag, size = 0x4, scoped, tag = 'scoped memory for tpu_custom_call.1']
    #allocation7 [shape = 'u8[8192]{0}', space=vmem, size = 0x2000, scoped, tag = 'output window, operand 0']
    %8 = vsyncpa [#allocation3], 0
    %s9 = scalar_lea.sflag [#allocation3], 1
    %10 = vsyncpa %s9, 0
    %11 = vsyncpa [#allocation6], 0
    %12 = vsyncpa [#allocation4], 0
    %s13 = scalar_lea.sflag [#allocation4], 1
    %14 = vsyncpa %s13, 0
    loop: start=0, step=1, limit=4
    $region2: #{tpu_custom_call.1} parent=1 // loop_pre_header
      _
    $region3: #{tpu_custom_call.1} parent=1 // loop_header
      %s16 = sphi 0, %s20
      %p17 = scmp.ge.s32.totalorder %s16, 4
      %s26 = sphi 0, %s28
      %s29 = sphi 0, %s26
      %s30 = sphi 0, %s29
      %s46 = sphi 0, %s30
      %s50 = sphi 0, %s50
      %s52 = sphi 0, %s50
      %s53 = sphi 0, %s52
      %s67 = sphi 0, %s53
      %s71 = sphi 0, %s71
      %s73 = sphi 0, %s71
      %s74 = sphi 0, %s73
      %s88 = sphi 0, %s74
      %s94 = sphi 0, %s96
      %s97 = sphi 0, %s94
      %s98 = sphi 0, %s97
      %s114 = sphi 0, %s98
    $region4: #{tpu_custom_call.1} parent=1 // loop_header_branch
      %19 = sbr.rel (%p17) target = $region8
    $region5: #{tpu_custom_call.1} parent=1 // loop_body
      %s21 = ssub.s32 %s16, 1
      %s22 = ssub.s32 %s16, 2
      %s23 = sadd.s32 %s16, 1
      %s24 = ssub.s32 %s16, %s23
      %p25 = scmp.eq.s32.totalorder %s24, 0
      %s27 = sadd.s32 %s26, 1
      %s28 = scalar_select %p25, %s26, %s27
      %p31 = pneg %p25
      %p32 = scmp.eq.s32.totalorder %s16, 1
      %p33 = por %p31, %p32
      %p34 = scmp.ne.s32.totalorder %s26, %s29
      %p35 = scmp.eq.s32.totalorder %s16, 0
      %p36 = por %p34, %p35
      %p37 = scmp.ne.s32.totalorder %s26, %s29
      %p38 = scmp.eq.s32.totalorder %s21, 1
      %p39 = por %p37, %p38
      %p40 = scmp.ne.s32.totalorder %s29, %s30
      %p41 = scmp.eq.s32.totalorder %s21, 0
      %p42 = por %p40, %p41
      %p43 = scmp.ne.s32.totalorder %s29, %s30
      %p44 = scmp.eq.s32.totalorder %s22, 1
      %p45 = por %p43, %p44
      %p47 = scmp.ne.s32.totalorder %s30, %s46
      %p48 = scmp.eq.s32.totalorder %s22, 0
      %p49 = por %p47, %p48
      %s51 = sadd.s32 %s50, 1
      %p54 = scmp.eq.s32.totalorder %s16, 1
      %p55 = scmp.ne.s32.totalorder %s50, %s52
      %p56 = scmp.eq.s32.totalorder %s16, 0
      %p57 = por %p55, %p56
      %p58 = scmp.ne.s32.totalorder %s50, %s52
      %p59 = scmp.eq.s32.totalorder %s21, 1
      %p60 = por %p58, %p59
      %p61 = scmp.ne.s32.totalorder %s52, %s53
      %p62 = scmp.eq.s32.totalorder %s21, 0
      %p63 = por %p61, %p62
      %p64 = scmp.ne.s32.totalorder %s52, %s53
      %p65 = scmp.eq.s32.totalorder %s22, 1
      %p66 = por %p64, %p65
      %p68 = scmp.ne.s32.totalorder %s53, %s67
      %p69 = scmp.eq.s32.totalorder %s22, 0
      %p70 = por %p68, %p69
      %s72 = sadd.s32 %s71, 1
      %p75 = scmp.eq.s32.totalorder %s16, 1
      %p76 = scmp.ne.s32.totalorder %s71, %s73
      %p77 = scmp.eq.s32.totalorder %s16, 0
      %p78 = por %p76, %p77
      %p79 = scmp.ne.s32.totalorder %s71, %s73
      %p80 = scmp.eq.s32.totalorder %s21, 1
      %p81 = por %p79, %p80
      %p82 = scmp.ne.s32.totalorder %s73, %s74
      %p83 = scmp.eq.s32.totalorder %s21, 0
      %p84 = por %p82, %p83
      %p85 = scmp.ne.s32.totalorder %s73, %s74
      %p86 = scmp.eq.s32.totalorder %s22, 1
      %p87 = por %p85, %p86
      %p89 = scmp.ne.s32.totalorder %s74, %s88
      %p90 = scmp.eq.s32.totalorder %s22, 0
      %p91 = por %p89, %p90
      %s92 = ssub.s32 %s16, %s23
      %p93 = scmp.eq.s32.totalorder %s92, 0
      %s95 = sadd.s32 %s94, 1
      %s96 = scalar_select %p93, %s94, %s95
      %p99 = pneg %p93
      %p100 = scmp.eq.s32.totalorder %s16, 1
      %p101 = por %p99, %p100
      %p102 = scmp.ne.s32.totalorder %s94, %s97
      %p103 = scmp.eq.s32.totalorder %s16, 0
      %p104 = por %p102, %p103
      %p105 = scmp.ne.s32.totalorder %s94, %s97
      %p106 = scmp.eq.s32.totalorder %s21, 1
      %p107 = por %p105, %p106
      %p108 = scmp.ne.s32.totalorder %s97, %s98
      %p109 = scmp.eq.s32.totalorder %s21, 0
      %p110 = por %p108, %p109
      %p111 = scmp.ne.s32.totalorder %s97, %s98
      %p112 = scmp.eq.s32.totalorder %s22, 1
      %p113 = por %p111, %p112
      %p115 = scmp.ne.s32.totalorder %s98, %s114
      %p116 = scmp.eq.s32.totalorder %s22, 0
      %p117 = por %p115, %p116
      %p118 = scmp.le.s32.totalorder 1, %s16
      %p119 = scmp.lt.s32.totalorder %s16, 3
      %p120 = pnand %p118, %p119
      %p121 = pneg %p120
      // Predicated region
      $region9: #{tpu_custom_call.1} parent=5 // pred_check
        _
      $region10: #{tpu_custom_call.1} parent=5 // pred_check_branch
        %123 = sbr.rel (%p120) target = $region12
      $region11: #{tpu_custom_call.1} parent=5 // pred_region
        %s124 = ssub.s32 %s16, 1
        // Predicated region
        $region13: #{tpu_custom_call.1} parent=11 // pred_check
          %p125 = pneg %p63
        $region14: #{tpu_custom_call.1} parent=11 // pred_check_branch
          %127 = sbr.rel (%p125) target = $region16
        $region15: #{tpu_custom_call.1} parent=11 // pred_region
          %s129 = ssub.s32 64, 64
          %130 = vsyncadd [#allocation6], %s129
          %s132 = sshll.u32 [#allocation5], 4
          %s133 = int_to_ptr.vmem [resolvable:$true] %s132
          %135 = dma.hbm_to_vmem [thread:$0]  %s1, 64, %s133, [#allocation6]
        $region16: #{tpu_custom_call.1} parent=11 // pred_fallthru
          _
        // Predicated region
        $region17: #{tpu_custom_call.1} parent=11 // pred_check
          %p136 = pneg %p84
        $region18: #{tpu_custom_call.1} parent=11 // pred_check_branch
          %138 = sbr.rel (%p136) target = $region20
        $region19: #{tpu_custom_call.1} parent=11 // pred_region
          _
        $region20: #{tpu_custom_call.1} parent=11 // pred_fallthru
          _
      $region12: #{tpu_custom_call.1} parent=5 // pred_fallthru
        _
      %p139 = scmp.lt.s32.totalorder %s16, 2
      // Predicated region
      $region21: #{tpu_custom_call.1} parent=5 // pred_check
        %p140 = pneg %p139
      $region22: #{tpu_custom_call.1} parent=5 // pred_check_branch
        %142 = sbr.rel (%p140) target = $region24
      $region23: #{tpu_custom_call.1} parent=5 // pred_region
        // Predicated region
        $region25: #{tpu_custom_call.1} parent=23 // pred_check
          %p143 = pneg %p36
        $region26: #{tpu_custom_call.1} parent=23 // pred_check_branch
          %145 = sbr.rel (%p143) target = $region28
        $region27: #{tpu_custom_call.1} parent=23 // pred_region
          %s146 = sand.u32 %s26, 1
          %s147 = scalar_lea.sflag [#allocation3], %s146
          %s148 = sand.u32 %s26, 1
          %s149 = smul.addr %s148, 48
          %s150 = scalar_lea.vmem [#allocation2], %s149
          %s152 = ssub.s32 768, 768
          %153 = vsyncadd %s147, %s152
          %s154 = smul.addr %s16, 6
          %s155 = smul.addr %s154, 128
          %s156 = scalar_lea.hbm %s0, %s155
          %s158 = sshll.u32 %s150, 4
          %s159 = int_to_ptr.vmem [resolvable:$true] %s158
          %161 = dma.hbm_to_vmem [thread:$0]  %s156, 768, %s159, %s147
        $region28: #{tpu_custom_call.1} parent=23 // pred_fallthru
          _
      $region24: #{tpu_custom_call.1} parent=5 // pred_fallthru
        _
      %p162 = scmp.le.s32.totalorder 1, %s16
      %p163 = scmp.lt.s32.totalorder %s16, 3
      %p164 = pnand %p162, %p163
      %p165 = pneg %p164
      // Predicated region
      $region29: #{tpu_custom_call.1} parent=5 // pred_check
        _
      $region30: #{tpu_custom_call.1} parent=5 // pred_check_branch
        %167 = sbr.rel (%p164) target = $region32
      $region31: #{tpu_custom_call.1} parent=5 // pred_region
        %s168 = ssub.s32 %s16, 1
        %s169 = sand.u32 %s29, 1
        %s170 = scalar_lea.sflag [#allocation3], %s169
        %s171 = sand.u32 %s29, 1
        %s172 = smul.addr %s171, 48
        %s173 = scalar_lea.vmem [#allocation2], %s172
        // Predicated region
        $region33: #{tpu_custom_call.1} parent=31 // pred_check
          %p174 = pneg %p42
        $region34: #{tpu_custom_call.1} parent=31 // pred_check_branch
          %176 = sbr.rel (%p174) target = $region36
        $region35: #{tpu_custom_call.1} parent=31 // pred_region
          %177 = dma.done %s170, 768
        $region36: #{tpu_custom_call.1} parent=31 // pred_fallthru
          _
        // Predicated region
        $region37: #{tpu_custom_call.1} parent=31 // pred_check
          %p178 = pneg %p63
        $region38: #{tpu_custom_call.1} parent=31 // pred_check_branch
          %180 = sbr.rel (%p178) target = $region40
        $region39: #{tpu_custom_call.1} parent=31 // pred_region
          %181 = dma.done [#allocation6], 64
        $region40: #{tpu_custom_call.1} parent=31 // pred_fallthru
          _
        %s182 = sand.u32 %s29, 1
        %s183 = scalar_lea.sflag [#allocation3], %s182
        %s184 = sand.u32 %s29, 1
        %s185 = smul.addr %s184, 48
        %s186 = scalar_lea.vmem [#allocation2], %s185
        %p187 = pneg %p42
        %p188 = pneg %p39
        %p189 = pneg %p63
        %p190 = pneg %p60
        %p191 = pneg %p84
        %p192 = pneg %p81
        %p193 = pneg %p110
        %p194 = pneg %p107
        %s195 = sand.u32 %s97, 1
        %s196 = scalar_lea.sflag [#allocation4], %s195
        %s197 = sand.u32 %s97, 1
        %s198 = smul.addr %s197, 8
        %s199 = scalar_lea.vmem [#allocation7], %s198
        %v200 = vld [vmem:[%s173] sm:$0xff]
        %v201 = vld [vmem:[%s173 + $0x8] sm:$0xff]
        %v202 = vadd.f32 %v200, %v201
        %203 = vadd.xlane.f32.xlu0 %v202
        %v204 = vpop.xlane.xlu0 %203
        %v205 = vld [vmem:[#allocation5] sm:$0x1]
        %v206 = vlaneseq
        %v207 = vshrl.u32 %v206, 7
        %v208 = vsub.s32 0, %v207
        %v209 = vrot.slane %v205, %v208
        %v210 = vmul.f32 %v204, %v209
        %v211 = vld [vmem:[%s173 + $0x10] sm:$0xff]
        %v212 = vld [vmem:[%s173 + $0x18] sm:$0xff]
        %v213 = vadd.f32 %v211, %v212
        %214 = vadd.xlane.f32.xlu0 %v213
        %v215 = vpop.xlane.xlu0 %214
        %v216 = vld [vmem:[#allocation5 + $0x1] sm:$0x1]
        %v217 = vlaneseq
        %v218 = vshrl.u32 %v217, 7
        %v219 = vsub.s32 0, %v218
        %v220 = vrot.slane %v216, %v219
        %v221 = vmul.f32 %v215, %v220
        %v222 = vadd.f32 %v210, %v221
        %v223 = vld [vmem:[%s173 + $0x20] sm:$0xff]
        %v224 = vld [vmem:[%s173 + $0x28] sm:$0xff]
        %v225 = vadd.f32 %v223, %v224
        %226 = vadd.xlane.f32.xlu0 %v225
        %v227 = vpop.xlane.xlu0 %226
        %v228 = vld [vmem:[#allocation5 + $0x2] sm:$0x1]
        %v229 = vlaneseq
        %v230 = vshrl.u32 %v229, 7
        %v231 = vsub.s32 0, %v230
        %v232 = vrot.slane %v228, %v231
        %v233 = vmul.f32 %v227, %v232
        %v234 = vadd.f32 %v222, %v233
        %v235 = vld [vmem:[%s2] sm:$0x1]
        %v237 = vlaneseq
        %v238 = vshrl.u32 %v237, 7
        %v239 = vsub.s32 0, %v238
        %v240 = vrot.slane %v235, %v239
        %v242 = vadd.f32 %v234, %v240
        %vm243 = vcmask 80896
        %244 = vst.msk [vmem:[%s199] sm:$0xff] %vm243, %v242
        %s245 = sand.u32 %s97, 1
        %s246 = scalar_lea.sflag [#allocation4], %s245
        %s247 = sand.u32 %s97, 1
        %s248 = smul.addr %s247, 8
        %s249 = scalar_lea.vmem [#allocation7], %s248
        // Predicated region
        $region41: #{tpu_custom_call.1} parent=31 // pred_check
          %p250 = pneg %p107
        $region42: #{tpu_custom_call.1} parent=31 // pred_check_branch
          %252 = sbr.rel (%p250) target = $region44
        $region43: #{tpu_custom_call.1} parent=31 // pred_region
          %s254 = ssub.s32 128, 128
          %255 = vsyncadd %s246, %s254
          %s256 = smul.addr %s21, 128
          %s257 = scalar_lea.hbm %s3, %s256
          %s259 = sshll.u32 %s249, 4
          %s260 = int_to_ptr.vmem [resolvable:$true] %s259
          %262 = dma.vmem_to_hbm [thread:$0]  %s260, 128, %s257, %s246
        $region44: #{tpu_custom_call.1} parent=31 // pred_fallthru
          _
      $region32: #{tpu_custom_call.1} parent=5 // pred_fallthru
        _
      %p263 = scmp.le.s32.totalorder 2, %s16
      // Predicated region
      $region45: #{tpu_custom_call.1} parent=5 // pred_check
        %p264 = pneg %p263
      $region46: #{tpu_custom_call.1} parent=5 // pred_check_branch
        %266 = sbr.rel (%p264) target = $region48
      $region47: #{tpu_custom_call.1} parent=5 // pred_region
        %s267 = ssub.s32 %s16, 2
        // Predicated region
        $region49: #{tpu_custom_call.1} parent=47 // pred_check
          %p268 = pneg %p113
        $region50: #{tpu_custom_call.1} parent=47 // pred_check_branch
          %270 = sbr.rel (%p268) target = $region52
        $region51: #{tpu_custom_call.1} parent=47 // pred_region
          %s271 = sand.u32 %s98, 1
          %s272 = scalar_lea.sflag [#allocation4], %s271
          %s273 = sand.u32 %s98, 1
          %s274 = smul.addr %s273, 8
          %s275 = scalar_lea.vmem [#allocation7], %s274
          %276 = dma.done %s272, 128
        $region52: #{tpu_custom_call.1} parent=47 // pred_fallthru
          _
      $region48: #{tpu_custom_call.1} parent=5 // pred_fallthru
        _
    $region6: #{tpu_custom_call.1} parent=1 // loop_footer
      %s20 = sadd.s32 1, %s16
    $region7: #{tpu_custom_call.1} parent=1 // loop_footer_branch
      %15 = sbr.rel target = $region3
    $region8: #{tpu_custom_call.1} parent=1 // loop_exit
      _
    %277 = vsyncpa [#allocation3], 1
    %s278 = scalar_lea.sflag [#allocation3], 1
    %279 = vsyncpa %s278, 1
    %280 = vsyncpa [#allocation6], 1
    %281 = vsyncpa [#allocation4], 1
    %s282 = scalar_lea.sflag [#allocation4], 1
    %283 = vsyncpa %s282, 1

</llo_original>
